<compile_context>
chip_gen: v7x
topology: tpu7x:2x2x1
jax: 0.10.0
libtpu: 0.0.40
codegen_flags: <defaults>
</compile_context>

<pallas_src>
import jax
import jax.numpy as jnp
from jax import lax
from jax.experimental import pallas as pl
from jax.experimental.pallas import tpu as pltpu


def _round_up(n, m):
    return ((n + m - 1) // m) * m


def cosine_softmax_kernel(x_ref, wfc_t_ref, bfc_ref, clsw_ref,
                          feat_ref, logits_ref):
    # ---- fc: x @ W_fc.T + b (transposed+padded weight is VMEM-resident) ----
    x = x_ref[...]                                             # (TB, Dp)
    y = jnp.dot(x, wfc_t_ref[...], preferred_element_type=jnp.float32)
    y = y + bfc_ref[...]                                       # (1, Dp) broadcast

    # ---- L2-normalize rows: 1/max(||y||, 1e-8) == rsqrt(max(sum(y^2), 1e-16))
    ss = jnp.sum(y * y, axis=1, keepdims=True)                 # (TB, 1)
    inv_norm = lax.rsqrt(jnp.maximum(ss, 1e-16))               # EUP slot
    feat = y * inv_norm                                        # (TB, Dp)

    # ---- cosine logits: classifier weight already carries scale/||w||_col ----
    logits = jnp.dot(feat, clsw_ref[...],
                     preferred_element_type=jnp.float32)       # (TB, Np)

    feat_ref[...] = feat.astype(feat_ref.dtype)
    logits_ref[...] = logits.astype(logits_ref.dtype)


def prepare_params(w_fc, b_fc, cls_weights, scale):
    """One-time, input-independent parameter preprocessing.

    In a real model this runs once at parameter load time (so the transpose,
    padding and weight normalization never touch the per-step hot path).
    """
    D = w_fc.shape[1]
    nclass = cls_weights.shape[1]
    Dp = _round_up(D, 128)
    Np = _round_up(nclass, 128)

    # fc weight, transposed (so kernel does x @ Wt) and zero-padded to Dp x Dp.
    wfc_t = jnp.zeros((Dp, Dp), jnp.float32).at[:D, :D].set(
        jnp.asarray(w_fc, jnp.float32).T)
    bfc = jnp.zeros((1, Dp), jnp.float32).at[0, :D].set(
        jnp.asarray(b_fc, jnp.float32))

    # Fold per-class inverse L2 norm and the scalar scale into the classifier
    # weights: feat @ (w * scale/||w||_col) == scale * feat @ normalize(w, dim=0)
    col_norm = jnp.sqrt(jnp.sum(jnp.square(cls_weights), axis=0, keepdims=True))
    inv_wnorm = 1.0 / jnp.maximum(col_norm, 1e-8)
    clsw_scaled = jnp.asarray(cls_weights, jnp.float32) * (scale * inv_wnorm)
    clsw = jnp.zeros((Dp, Np), jnp.float32).at[:D, :nclass].set(clsw_scaled)

    return {"wfc_t": wfc_t, "bfc": bfc, "clsw": clsw,
            "D": D, "nclass": nclass, "Dp": Dp, "Np": Np}


def cosine_softmax_forward(x, params, *, tile_b=128):
    """x: (B, D) f32. Returns (features (B, D), logits (B, nclass))."""
    # TODO(synk): dropout(p=0.1) is PyTorch training-mode only; eval-mode
    # (identity) semantics are implemented here. A pltpu.prng_* mask could be
    # added for training-mode dropout if needed.
    B, D = x.shape
    Dp, Np = params["Dp"], params["Np"]
    nclass = params["nclass"]

    # Batch tile: at least 8 (sublane), at most tile_b; pad batch to a multiple.
    TILE_B = min(tile_b, _round_up(B, 8))
    Bp = _round_up(B, TILE_B)
    x_p = jnp.zeros((Bp, Dp), jnp.float32).at[:B, :D].set(
        jnp.asarray(x, jnp.float32))

    grid = (Bp // TILE_B,)

    # VMEM budget: double-buffered streamed tiles + (conservatively x2)
    # resident weights; give headroom and stay well under v7x's 64 MiB.
    tile_bytes = 4 * (2 * TILE_B * Dp        # x in
                      + 2 * TILE_B * Dp      # feat out
                      + 2 * TILE_B * Np      # logits out
                      + 2 * Dp * Dp          # fc weight
                      + 2 * 8 * Dp           # bias (sublane-padded)
                      + 2 * Dp * Np)         # classifier weight
    vmem_limit = min(max(2 * tile_bytes, 16 << 20), 60 << 20)

    feat_p, logits_p = pl.pallas_call(
        cosine_softmax_kernel,
        out_shape=(
            jax.ShapeDtypeStruct((Bp, Dp), jnp.float32),
            jax.ShapeDtypeStruct((Bp, Np), jnp.float32),
        ),
        grid=grid,
        in_specs=[
            pl.BlockSpec((TILE_B, Dp), lambda i: (i, 0)),   # x: streamed
            pl.BlockSpec((Dp, Dp), lambda i: (0, 0)),       # fc weight: resident
            pl.BlockSpec((1, Dp), lambda i: (0, 0)),        # bias: resident
            pl.BlockSpec((Dp, Np), lambda i: (0, 0)),       # cls weight: resident
        ],
        out_specs=(
            pl.BlockSpec((TILE_B, Dp), lambda i: (i, 0)),   # features
            pl.BlockSpec((TILE_B, Np), lambda i: (i, 0)),   # logits
        ),
        compiler_params=pltpu.CompilerParams(
            dimension_semantics=("parallel",),
            vmem_limit_bytes=vmem_limit,
        ),
    )(x_p, params["wfc_t"], params["bfc"], params["clsw"])

    return feat_p[:B, :D], logits_p[:B, :nclass]


def _reference(x, w_fc, b_fc, cls_weights, scale):
    y = x @ w_fc.T + b_fc
    feat = y / jnp.maximum(jnp.linalg.norm(y, axis=1, keepdims=True), 1e-8)
    wn = cls_weights / jnp.maximum(
        jnp.linalg.norm(cls_weights, axis=0, keepdims=True), 1e-8)
    return feat, scale * (feat @ wn)


if __name__ == "__main__":
    key = jax.random.PRNGKey(0)
    B, D, NCLASS = 8, 32, 256   # small synthetic shapes (features_dim=32)

    k_x, k_w, k_wfc, k_bfc, k_s = jax.random.split(key, 5)

    x = jax.random.normal(k_x, (B, D), dtype=jnp.float32)

    # classifier weights: xavier_uniform_ over (D, NCLASS)
    limit = jnp.sqrt(6.0 / (D + NCLASS))
    cls_weights = jax.random.uniform(k_w, (D, NCLASS), jnp.float32, -limit, limit)

    # fc = nn.Linear(D, D): weight (out, in), bias (out,)
    bound = 1.0 / jnp.sqrt(D)
    w_fc = jax.random.uniform(k_wfc, (D, D), jnp.float32, -bound, bound)
    b_fc = jax.random.uniform(k_bfc, (D,), jnp.float32, -bound, bound)

    # scale = softplus(randn(()))
    scale = jax.nn.softplus(jax.random.normal(k_s, (), dtype=jnp.float32))

    params = prepare_params(w_fc, b_fc, cls_weights, scale)
    feat, logits = cosine_softmax_forward(x, params)
    jax.block_until_ready((feat, logits))

    feat_ref, logits_ref = _reference(x, w_fc, b_fc, cls_weights, scale)
    assert feat.shape == (B, D) and logits.shape == (B, NCLASS)
    assert jnp.allclose(feat, feat_ref, atol=1e-5, rtol=1e-5), \
        float(jnp.max(jnp.abs(feat - feat_ref)))
    assert jnp.allclose(logits, logits_ref, atol=1e-5, rtol=1e-5), \
        float(jnp.max(jnp.abs(logits - logits_ref)))

    print("KERNEL_OK")
</pallas_src>

<mosaic_0001>
module attributes {stable_mosaic.version = 11 : i64} {
  func.func @cosine_softmax_kernel(%arg0: i32, %arg1: memref<8x128xf32, #tpu.memory_space<vmem>>, %arg2: memref<128x128xf32, #tpu.memory_space<vmem>>, %arg3: memref<1x128xf32, #tpu.memory_space<vmem>>, %arg4: memref<128x256xf32, #tpu.memory_space<vmem>>, %arg5: memref<8x128xf32, #tpu.memory_space<vmem>>, %arg6: memref<8x256xf32, #tpu.memory_space<vmem>>) attributes {dimension_semantics = [#tpu.dimension_semantics<parallel>], iteration_bounds = array<i64: 1>, scalar_prefetch = 0 : i64, scratch_operands = 0 : i64, tpu.core_type = #tpu.core_type<tc>, window_params = [{transform_indices = @transform_0, window_bounds = array<i64: 8, 128>}, {pipeline_mode = #tpu.pipeline_mode<synchronous>, transform_indices = @transform_1, window_bounds = array<i64: 128, 128>}, {pipeline_mode = #tpu.pipeline_mode<synchronous>, transform_indices = @transform_2, window_bounds = array<i64: 1, 128>}, {pipeline_mode = #tpu.pipeline_mode<synchronous>, transform_indices = @transform_3, window_bounds = array<i64: 128, 256>}, {transform_indices = @transform_4, window_bounds = array<i64: 8, 128>}, {transform_indices = @transform_5, window_bounds = array<i64: 8, 256>}]} {
    %c0 = arith.constant 0 : index
    %c0_0 = arith.constant 0 : index
    %0 = vector.load %arg1[%c0, %c0_0] : memref<8x128xf32, #tpu.memory_space<vmem>>, vector<8x128xf32>
    %c0_1 = arith.constant 0 : index
    %c0_2 = arith.constant 0 : index
    %1 = vector.load %arg2[%c0_1, %c0_2] : memref<128x128xf32, #tpu.memory_space<vmem>>, vector<128x128xf32>
    %cst = arith.constant dense<0.000000e+00> : vector<8x128xf32>
    %2 = tpu.matmul %0, %1, %cst {dimension_numbers = #tpu.dot_dimension_numbers<[1], [0], [0], [1], [0, 0, 1, 1], [], []>} : vector<8x128xf32>, vector<128x128xf32>, vector<8x128xf32> -> vector<8x128xf32>
    %c0_3 = arith.constant 0 : index
    %c0_4 = arith.constant 0 : index
    %3 = vector.load %arg3[%c0_3, %c0_4] : memref<1x128xf32, #tpu.memory_space<vmem>>, vector<1x128xf32>
    %4 = vector.broadcast %3 : vector<1x128xf32> to vector<8x128xf32>
    %5 = arith.addf %2, %4 : vector<8x128xf32>
    %6 = arith.mulf %5, %5 : vector<8x128xf32>
    %cst_5 = arith.constant dense<0.000000e+00> : vector<8xf32>
    %7 = vector.multi_reduction <add>, %6, %cst_5 [1] : vector<8x128xf32> to vector<8xf32>
    %8 = vector.shape_cast %7 : vector<8xf32> to vector<8x1xf32>
    %cst_6 = arith.constant 1.000000e-16 : f32
    %9 = vector.broadcast %cst_6 : f32 to vector<8x1xf32>
    %10 = arith.maximumf %8, %9 : vector<8x1xf32>
    %11 = math.rsqrt %10 : vector<8x1xf32>
    %12 = vector.broadcast %11 : vector<8x1xf32> to vector<8x128xf32>
    %13 = arith.mulf %5, %12 : vector<8x128xf32>
    %c0_7 = arith.constant 0 : index
    %c0_8 = arith.constant 0 : index
    %14 = vector.load %arg4[%c0_7, %c0_8] : memref<128x256xf32, #tpu.memory_space<vmem>>, vector<128x256xf32>
    %cst_9 = arith.constant dense<0.000000e+00> : vector<8x256xf32>
    %15 = tpu.matmul %13, %14, %cst_9 {dimension_numbers = #tpu.dot_dimension_numbers<[1], [0], [0], [1], [0, 0, 1, 1], [], []>} : vector<8x128xf32>, vector<128x256xf32>, vector<8x256xf32> -> vector<8x256xf32>
    %c0_10 = arith.constant 0 : index
    %c0_11 = arith.constant 0 : index
    %16 = vector.load %arg5[%c0_10, %c0_11] : memref<8x128xf32, #tpu.memory_space<vmem>>, vector<8x128xf32>
    tpu.vector_store %arg5[%c0_10, %c0_11], %13 {strides = array<i32>} : memref<8x128xf32, #tpu.memory_space<vmem>>, vector<8x128xf32>,
    %c0_12 = arith.constant 0 : index
    %c0_13 = arith.constant 0 : index
    %17 = vector.load %arg6[%c0_12, %c0_13] : memref<8x256xf32, #tpu.memory_space<vmem>>, vector<8x256xf32>
    tpu.vector_store %arg6[%c0_12, %c0_13], %15 {strides = array<i32>} : memref<8x256xf32, #tpu.memory_space<vmem>>, vector<8x256xf32>,
    return
  }
  func.func @transform_0(%arg0: i32) -> (i32, i32) {
    %c0_i32 = arith.constant 0 : i32
    %c0_i32_0 = arith.constant 0 : i32
    return %arg0, %c0_i32 : i32, i32
  }
  func.func @transform_1(%arg0: i32) -> (i32, i32) {
    %c0_i32 = arith.constant 0 : i32
    %c0_i32_0 = arith.constant 0 : i32
    %c0_i32_1 = arith.constant 0 : i32
    return %c0_i32, %c0_i32_0 : i32, i32
  }
  func.func @transform_2(%arg0: i32) -> (i32, i32) {
    %c0_i32 = arith.constant 0 : i32
    %c0_i32_0 = arith.constant 0 : i32
    %c0_i32_1 = arith.constant 0 : i32
    return %c0_i32, %c0_i32_0 : i32, i32
  }
  func.func @transform_3(%arg0: i32) -> (i32, i32) {
    %c0_i32 = arith.constant 0 : i32
    %c0_i32_0 = arith.constant 0 : i32
    %c0_i32_1 = arith.constant 0 : i32
    return %c0_i32, %c0_i32_0 : i32, i32
  }
  func.func @transform_4(%arg0: i32) -> (i32, i32) {
    %c0_i32 = arith.constant 0 : i32
    %c0_i32_0 = arith.constant 0 : i32
    return %arg0, %c0_i32 : i32, i32
  }
  func.func @transform_5(%arg0: i32) -> (i32, i32) {
    %c0_i32 = arith.constant 0 : i32
    %c0_i32_0 = arith.constant 0 : i32
    return %arg0, %c0_i32 : i32, i32
  }
}

</mosaic_0001>

<llo_original>
// kernel: tpu_custom_call.1
$region0: #{tpu_custom_call.1}
  #allocation0 [shape = 'u32[]', space=smem, size = 0x4, offset = 0x4, fixed_abs, tag = 'smem constant byte address 0x4 - core index']
  #allocation1 [shape = 'u32[144,128]{1,0:T(1,128)}', space=vmem, size = 0x12000, scoped, tag = 'internal scratch']
  %s0 = inlined_call_operand.hbm [shape: f32[8,128], index: 0, kind: input, shape index: {}]
  %s1 = inlined_call_operand.hbm [shape: f32[128,128], index: 1, kind: input, shape index: {}]
  %s2 = inlined_call_operand.vmem [shape: f32[1,128], index: 2, kind: input, shape index: {}]
  %s3 = inlined_call_operand.hbm [shape: f32[128,256], index: 3, kind: input, shape index: {}]
  %s4 = inlined_call_operand.hbm [shape: f32[8,128], index: 4, kind: output, shape index: {0}]
  %s5 = inlined_call_operand.hbm [shape: f32[8,256], index: 5, kind: output, shape index: {1}]
  %6 = xla_tuple %s4, %s5
  %s7 = sld [smem:[#allocation0]]
  $region46: #{tpu_custom_call.1} parent=0
    _
  %s9 = ssub.s32 1, %s7
  %s10 = scalar_select 0, %s9, %s7
  $region1: #{tpu_custom_call.1} parent=0
    #allocation2 [shape = 'u8[4096]{0}', space=vmem, size = 0x1000, scoped, tag = 'input window, operand 0, single buffered']
    #allocation3 [shape = 's32[1]{0}', space=sflag, size = 0x4, scoped, tag = 'scoped memory for tpu_custom_call.1']
    #allocation4 [shape = 's32[1]{0}', space=sflag, size = 0x4, scoped, tag = 'scoped memory for tpu_custom_call.1']
    #allocation5 [shape = 'u8[65536]{0}', space=vmem, size = 0x10000, scoped, tag = 'input window, operand 1, single buffered']
    #allocation6 [shape = 's32[1]{0}', space=sflag, size = 0x4, scoped, tag = 'scoped memory for tpu_custom_call.1']
    #allocation7 [shape = 'u8[131072]{0}', space=vmem, size = 0x20000, scoped, tag = 'input window, operand 3, single buffered']
    #allocation8 [shape = 'u8[4096]{0}', space=vmem, size = 0x1000, scoped, tag = 'output window, operand 0, single buffered']
    #allocation9 [shape = 'u8[8192]{0}', space=vmem, size = 0x2000, scoped, tag = 'output window, operand 1, single buffered']
    #allocation10 [shape = 's32[1]{0}', space=sflag, size = 0x4, scoped, tag = 'scoped memory for tpu_custom_call.1']
    %11 = vsyncpa [#allocation3], 0
    %12 = vsyncpa [#allocation6], 0
    %13 = vsyncpa [#allocation4], 0
    %14 = vsyncpa [#allocation10], 0
    // Predicated region
    $region2: #{tpu_custom_call.1} parent=1 // pred_check
      _
    $region3: #{tpu_custom_call.1} parent=1 // pred_check_branch
      %16 = sbr.rel (0) target = $region5
    $region4: #{tpu_custom_call.1} parent=1 // pred_region
      %s18 = ssub.s32 128, 128
      %19 = vsyncadd [#allocation3], %s18
      %s21 = sshll.u32 [#allocation2], 4
      %s22 = int_to_ptr.vmem [resolvable:$true] %s21
      %24 = dma.hbm_to_vmem [thread:$0]  %s0, 128, %s22, [#allocation3]
    $region5: #{tpu_custom_call.1} parent=1 // pred_fallthru
      _
    // Predicated region
    $region6: #{tpu_custom_call.1} parent=1 // pred_check
      _
    $region7: #{tpu_custom_call.1} parent=1 // pred_check_branch
      %26 = sbr.rel (0) target = $region9
    $region8: #{tpu_custom_call.1} parent=1 // pred_region
      %s28 = ssub.s32 2048, 2048
      %29 = vsyncadd [#allocation6], %s28
      %s30 = sshll.u32 [#allocation5], 4
      %s31 = int_to_ptr.vmem [resolvable:$true] %s30
      %36 = dma.hbm_to_vmem [thread:$0]  %s1, 2048, %s31, [#allocation6], 128, 128, 8
    $region9: #{tpu_custom_call.1} parent=1 // pred_fallthru
      _
    // Predicated region
    $region10: #{tpu_custom_call.1} parent=1 // pred_check
      _
    $region11: #{tpu_custom_call.1} parent=1 // pred_check_branch
      %38 = sbr.rel (0) target = $region13
    $region12: #{tpu_custom_call.1} parent=1 // pred_region
      _
    $region13: #{tpu_custom_call.1} parent=1 // pred_fallthru
      _
    // Predicated region
    $region14: #{tpu_custom_call.1} parent=1 // pred_check
      _
    $region15: #{tpu_custom_call.1} parent=1 // pred_check_branch
      %40 = sbr.rel (0) target = $region17
    $region16: #{tpu_custom_call.1} parent=1 // pred_region
      %s42 = ssub.s32 4096, 4096
      %43 = vsyncadd [#allocation6], %s42
      %s44 = sshll.u32 [#allocation7], 4
      %s45 = int_to_ptr.vmem [resolvable:$true] %s44
      %50 = dma.hbm_to_vmem [thread:$0]  %s3, 4096, %s45, [#allocation6], 256, 256, 16
    $region17: #{tpu_custom_call.1} parent=1 // pred_fallthru
      _
    // Predicated region
    $region18: #{tpu_custom_call.1} parent=1 // pred_check
      _
    $region19: #{tpu_custom_call.1} parent=1 // pred_check_branch
      %52 = sbr.rel (0) target = $region21
    $region20: #{tpu_custom_call.1} parent=1 // pred_region
      %53 = dma.done [#allocation3], 128
    $region21: #{tpu_custom_call.1} parent=1 // pred_fallthru
      _
    // Predicated region
    $region22: #{tpu_custom_call.1} parent=1 // pred_check
      _
    $region23: #{tpu_custom_call.1} parent=1 // pred_check_branch
      %55 = sbr.rel (0) target = $region25
    $region24: #{tpu_custom_call.1} parent=1 // pred_region
      %56 = dma.done [#allocation6], 2048
    $region25: #{tpu_custom_call.1} parent=1 // pred_fallthru
      _
    // Predicated region
    $region26: #{tpu_custom_call.1} parent=1 // pred_check
      _
    $region27: #{tpu_custom_call.1} parent=1 // pred_check_branch
      %58 = sbr.rel (0) target = $region29
    $region28: #{tpu_custom_call.1} parent=1 // pred_region
      %59 = dma.done [#allocation6], 4096
    $region29: #{tpu_custom_call.1} parent=1 // pred_fallthru
      _
    %v60 = vld [vmem:[#allocation2] sm:$0xff]
    %v61 = vld [vmem:[#allocation5] sm:$0xff]
    %v62 = vld [vmem:[#allocation5 + $0x8] sm:$0xff]
    %v63 = vld [vmem:[#allocation5 + $0x10] sm:$0xff]
    %v64 = vld [vmem:[#allocation5 + $0x18] sm:$0xff]
    %v65 = vld [vmem:[#allocation5 + $0x20] sm:$0xff]
    %v66 = vld [vmem:[#allocation5 + $0x28] sm:$0xff]
    %v67 = vld [vmem:[#allocation5 + $0x30] sm:$0xff]
    %v68 = vld [vmem:[#allocation5 + $0x38] sm:$0xff]
    %v69 = vld [vmem:[#allocation5 + $0x40] sm:$0xff]
    %v70 = vld [vmem:[#allocation5 + $0x48] sm:$0xff]
    %v71 = vld [vmem:[#allocation5 + $0x50] sm:$0xff]
    %v72 = vld [vmem:[#allocation5 + $0x58] sm:$0xff]
    %v73 = vld [vmem:[#allocation5 + $0x60] sm:$0xff]
    %v74 = vld [vmem:[#allocation5 + $0x68] sm:$0xff]
    %v75 = vld [vmem:[#allocation5 + $0x70] sm:$0xff]
    %v76 = vld [vmem:[#allocation5 + $0x78] sm:$0xff]
    %v77 = vld [vmem:[%s2] sm:$0x1]
    %v79 = vlaneseq
    %v80 = vshrl.u32 %v79, 7
    %v81 = vsub.s32 0, %v80
    %v82 = vrot.slane %v77, %v81
    %84 = vmatprep.subr.mxu0 0.0
    %85 = vmatpush1.msra.mxu0 %v61
    %86 = vmatprep.subr.mxu0 0.0
    %87 = vmatpush1.msra.mxu0 %v62
    %88 = vmatprep.subr.mxu0 0.0
    %89 = vmatpush1.msra.mxu0 %v63
    %90 = vmatprep.subr.mxu0 0.0
    %91 = vmatpush1.msra.mxu0 %v64
    %92 = vmatprep.subr.mxu0 0.0
    %93 = vmatpush1.msra.mxu0 %v65
    %94 = vmatprep.subr.mxu0 0.0
    %95 = vmatpush1.msra.mxu0 %v66
    %96 = vmatprep.subr.mxu0 0.0
    %97 = vmatpush1.msra.mxu0 %v67
    %98 = vmatprep.subr.mxu0 0.0
    %99 = vmatpush1.msra.mxu0 %v68
    %100 = vmatprep.subr.mxu0 0.0
    %101 = vmatpush1.msra.mxu0 %v69
    %102 = vmatprep.subr.mxu0 0.0
    %103 = vmatpush1.msra.mxu0 %v70
    %104 = vmatprep.subr.mxu0 0.0
    %105 = vmatpush1.msra.mxu0 %v71
    %106 = vmatprep.subr.mxu0 0.0
    %107 = vmatpush1.msra.mxu0 %v72
    %108 = vmatprep.subr.mxu0 0.0
    %109 = vmatpush1.msra.mxu0 %v73
    %110 = vmatprep.subr.mxu0 0.0
    %111 = vmatpush1.msra.mxu0 %v74
    %112 = vmatprep.subr.mxu0 0.0
    %113 = vmatpush1.msra.mxu0 %v75
    %114 = vmatprep.subr.mxu0 0.0
    %115 = vmatpush1.msra.mxu0 %v76
    %116 = vmatprep.subr.mxu0 0.0
    %117 = vmatpush1.msra.mxu0 0.0
    %118 = vmatprep.subr.mxu0 0.0
    %119 = vmatpush1.msra.mxu0 0.0
    %120 = vmatprep.subr.mxu0 0.0
    %121 = vmatpush1.msra.mxu0 0.0
    %122 = vmatprep.subr.mxu0 0.0
    %123 = vmatpush1.msra.mxu0 0.0
    %124 = vmatprep.subr.mxu0 0.0
    %125 = vmatpush1.msra.mxu0 0.0
    %126 = vmatprep.subr.mxu0 0.0
    %127 = vmatpush1.msra.mxu0 0.0
    %128 = vmatprep.subr.mxu0 0.0
    %129 = vmatpush1.msra.mxu0 0.0
    %130 = vmatprep.subr.mxu0 0.0
    %131 = vmatpush1.msra.mxu0 0.0
    %132 = vmatprep.subr.mxu0 0.0
    %133 = vmatpush1.msra.mxu0 0.0
    %134 = vmatprep.subr.mxu0 0.0
    %135 = vmatpush1.msra.mxu0 0.0
    %136 = vmatprep.subr.mxu0 0.0
    %137 = vmatpush1.msra.mxu0 0.0
    %138 = vmatprep.subr.mxu0 0.0
    %139 = vmatpush1.msra.mxu0 0.0
    %140 = vmatprep.subr.mxu0 0.0
    %141 = vmatpush1.msra.mxu0 0.0
    %142 = vmatprep.subr.mxu0 0.0
    %143 = vmatpush1.msra.mxu0 0.0
    %144 = vmatprep.subr.mxu0 0.0
    %145 = vmatpush1.msra.mxu0 0.0
    %146 = vmatprep.subr.mxu0 0.0
    %147 = vmatpush1.msra.mxu0 0.0
    %148 = vmatprep.mubr.f32.mxu0 0.0
    %149 = vmatmul.mubr.f32.gmra.mrb[0].mxu0 %v60
    %v150 = vpop.f32.mrb[0].mxu0
    %v151 = vadd.f32 %v82, %v150
    %v152 = vpop.f32.mrb[0].mxu0
    %153 = vdwg.mxu0
    %v154 = vmul.f32 %v151, %v151
    %155 = vadd.xlane.f32.xlu0 %v154
    %v156 = vpop.xlane.xlu0 %155
    %v157 = vmax.f32 %v156, 1e-16
    %v158 = vrsqrt.pop %v157
    %v159 = vmul.f32 %v151, %v158
    %v160 = vld [vmem:[#allocation7] sm:$0xff]
    %v161 = vld [vmem:[#allocation7 + $0x8] sm:$0xff]
    %v162 = vld [vmem:[#allocation7 + $0x10] sm:$0xff]
    %v163 = vld [vmem:[#allocation7 + $0x18] sm:$0xff]
    %v164 = vld [vmem:[#allocation7 + $0x20] sm:$0xff]
    %v165 = vld [vmem:[#allocation7 + $0x28] sm:$0xff]
    %v166 = vld [vmem:[#allocation7 + $0x30] sm:$0xff]
    %v167 = vld [vmem:[#allocation7 + $0x38] sm:$0xff]
    %v168 = vld [vmem:[#allocation7 + $0x40] sm:$0xff]
    %v169 = vld [vmem:[#allocation7 + $0x48] sm:$0xff]
    %v170 = vld [vmem:[#allocation7 + $0x50] sm:$0xff]
    %v171 = vld [vmem:[#allocation7 + $0x58] sm:$0xff]
    %v172 = vld [vmem:[#allocation7 + $0x60] sm:$0xff]
    %v173 = vld [vmem:[#allocation7 + $0x68] sm:$0xff]
    %v174 = vld [vmem:[#allocation7 + $0x70] sm:$0xff]
    %v175 = vld [vmem:[#allocation7 + $0x78] sm:$0xff]
    %v176 = vld [vmem:[#allocation7 + $0x80] sm:$0xff]
    %v177 = vld [vmem:[#allocation7 + $0x88] sm:$0xff]
    %v178 = vld [vmem:[#allocation7 + $0x90] sm:$0xff]
    %v179 = vld [vmem:[#allocation7 + $0x98] sm:$0xff]
    %v180 = vld [vmem:[#allocation7 + $0xa0] sm:$0xff]
    %v181 = vld [vmem:[#allocation7 + $0xa8] sm:$0xff]
    %v182 = vld [vmem:[#allocation7 + $0xb0] sm:$0xff]
    %v183 = vld [vmem:[#allocation7 + $0xb8] sm:$0xff]
    %v184 = vld [vmem:[#allocation7 + $0xc0] sm:$0xff]
    %v185 = vld [vmem:[#allocation7 + $0xc8] sm:$0xff]
    %v186 = vld [vmem:[#allocation7 + $0xd0] sm:$0xff]
    %v187 = vld [vmem:[#allocation7 + $0xd8] sm:$0xff]
    %v188 = vld [vmem:[#allocation7 + $0xe0] sm:$0xff]
    %v189 = vld [vmem:[#allocation7 + $0xe8] sm:$0xff]
    %v190 = vld [vmem:[#allocation7 + $0xf0] sm:$0xff]
    %v191 = vld [vmem:[#allocation7 + $0xf8] sm:$0xff]
    %192 = vmatprep.subr.mxu0 %v161
    %193 = vmatpush1.msra.mxu0 %v160
    %194 = vmatprep.subr.mxu0 %v163
    %195 = vmatpush1.msra.mxu0 %v162
    %196 = vmatprep.subr.mxu0 %v165
    %197 = vmatpush1.msra.mxu0 %v164
    %198 = vmatprep.subr.mxu0 %v167
    %199 = vmatpush1.msra.mxu0 %v166
    %200 = vmatprep.subr.mxu0 %v169
    %201 = vmatpush1.msra.mxu0 %v168
    %202 = vmatprep.subr.mxu0 %v171
    %203 = vmatpush1.msra.mxu0 %v170
    %204 = vmatprep.subr.mxu0 %v173
    %205 = vmatpush1.msra.mxu0 %v172
    %206 = vmatprep.subr.mxu0 %v175
    %207 = vmatpush1.msra.mxu0 %v174
    %208 = vmatprep.subr.mxu0 %v177
    %209 = vmatpush1.msra.mxu0 %v176
    %210 = vmatprep.subr.mxu0 %v179
    %211 = vmatpush1.msra.mxu0 %v178
    %212 = vmatprep.subr.mxu0 %v181
    %213 = vmatpush1.msra.mxu0 %v180
    %214 = vmatprep.subr.mxu0 %v183
    %215 = vmatpush1.msra.mxu0 %v182
    %216 = vmatprep.subr.mxu0 %v185
    %217 = vmatpush1.msra.mxu0 %v184
    %218 = vmatprep.subr.mxu0 %v187
    %219 = vmatpush1.msra.mxu0 %v186
    %220 = vmatprep.subr.mxu0 %v189
    %221 = vmatpush1.msra.mxu0 %v188
    %222 = vmatprep.subr.mxu0 %v191
    %223 = vmatpush1.msra.mxu0 %v190
    %224 = vmatprep.subr.mxu0 0.0
    %225 = vmatpush1.msra.mxu0 0.0
    %226 = vmatprep.subr.mxu0 0.0
    %227 = vmatpush1.msra.mxu0 0.0
    %228 = vmatprep.subr.mxu0 0.0
    %229 = vmatpush1.msra.mxu0 0.0
    %230 = vmatprep.subr.mxu0 0.0
    %231 = vmatpush1.msra.mxu0 0.0
    %232 = vmatprep.subr.mxu0 0.0
    %233 = vmatpush1.msra.mxu0 0.0
    %234 = vmatprep.subr.mxu0 0.0
    %235 = vmatpush1.msra.mxu0 0.0
    %236 = vmatprep.subr.mxu0 0.0
    %237 = vmatpush1.msra.mxu0 0.0
    %238 = vmatprep.subr.mxu0 0.0
    %239 = vmatpush1.msra.mxu0 0.0
    %240 = vmatprep.subr.mxu0 0.0
    %241 = vmatpush1.msra.mxu0 0.0
    %242 = vmatprep.subr.mxu0 0.0
    %243 = vmatpush1.msra.mxu0 0.0
    %244 = vmatprep.subr.mxu0 0.0
    %245 = vmatpush1.msra.mxu0 0.0
    %246 = vmatprep.subr.mxu0 0.0
    %247 = vmatpush1.msra.mxu0 0.0
    %248 = vmatprep.subr.mxu0 0.0
    %249 = vmatpush1.msra.mxu0 0.0
    %250 = vmatprep.subr.mxu0 0.0
    %251 = vmatpush1.msra.mxu0 0.0
    %252 = vmatprep.subr.mxu0 0.0
    %253 = vmatpush1.msra.mxu0 0.0
    %254 = vmatprep.subr.mxu0 0.0
    %255 = vmatpush1.msra.mxu0 0.0
    %256 = vmatprep.mubr.f32.mxu0 0.0
    %257 = vmatmul.mubr.f32.gmra.mrb[0].mxu0 %v159
    %v258 = vpop.f32.mrb[0].mxu0
    %v259 = vadd.f32 0.0, %v258
    %v260 = vpop.f32.mrb[0].mxu0
    %v261 = vadd.f32 0.0, %v260
    %262 = vdwg.mxu0
    %263 = vst [vmem:[#allocation8] sm:$0xff] %v159
    %264 = vst [vmem:[#allocation9] sm:$0xff] %v259
    %265 = vst [vmem:[#allocation9 + $0x8] sm:$0xff] %v261
    // Predicated region
    $region30: #{tpu_custom_call.1} parent=1 // pred_check
      _
    $region31: #{tpu_custom_call.1} parent=1 // pred_check_branch
      %267 = sbr.rel (0) target = $region33
    $region32: #{tpu_custom_call.1} parent=1 // pred_region
      %s269 = ssub.s32 128, 128
      %270 = vsyncadd [#allocation4], %s269
      %s272 = sshll.u32 [#allocation8], 4
      %s273 = int_to_ptr.vmem [resolvable:$true] %s272
      %275 = dma.vmem_to_hbm [thread:$0]  %s273, 128, %s4, [#allocation4]
    $region33: #{tpu_custom_call.1} parent=1 // pred_fallthru
      _
    // Predicated region
    $region34: #{tpu_custom_call.1} parent=1 // pred_check
      _
    $region35: #{tpu_custom_call.1} parent=1 // pred_check_branch
      %277 = sbr.rel (0) target = $region37
    $region36: #{tpu_custom_call.1} parent=1 // pred_region
      %s279 = ssub.s32 256, 256
      %280 = vsyncadd [#allocation10], %s279
      %s282 = sshll.u32 [#allocation9], 4
      %s283 = int_to_ptr.vmem [resolvable:$true] %s282
      %285 = dma.vmem_to_hbm [thread:$0]  %s283, 256, %s5, [#allocation10]
    $region37: #{tpu_custom_call.1} parent=1 // pred_fallthru
      _
    // Predicated region
    $region38: #{tpu_custom_call.1} parent=1 // pred_check
      _
    $region39: #{tpu_custom_call.1} parent=1 // pred_check_branch
      %287 = sbr.rel (0) target = $region41
    $region40: #{tpu_custom_call.1} parent=1 // pred_region
      %288 = dma.done [#allocation4], 128
    $region41: #{tpu_custom_call.1} parent=1 // pred_fallthru
      _
    // Predicated region
    $region42: #{tpu_custom_call.1} parent=1 // pred_check
      _
    $region43: #{tpu_custom_call.1} parent=1 // pred_check_branch
      %290 = sbr.rel (0) target = $region45
    $region44: #{tpu_custom_call.1} parent=1 // pred_region
      %291 = dma.done [#allocation10], 256
    $region45: #{tpu_custom_call.1} parent=1 // pred_fallthru
      _
    %292 = vsyncpa [#allocation3], 1
    %293 = vsyncpa [#allocation6], 1
    %294 = vsyncpa [#allocation4], 1
    %295 = vsyncpa [#allocation10], 1

</llo_original>
